<compile_context>
chip_gen: v5e
topology: v5e:2x2
jax: 0.10.0
libtpu: 0.0.40
codegen_flags: <defaults>
</compile_context>

<pallas_src>
import functools
import math

import jax
import jax.numpy as jnp
from jax.experimental import pallas as pl
from jax.experimental.pallas import tpu as pltpu


def _round_up(x, m):
    return (x + m - 1) // m * m


def _chip_config():
    """Returns (num_tensorcores, vmem_capacity_bytes, tm_default, th_default)."""
    kind = ""
    try:
        kind = jax.devices()[0].device_kind.lower()
    except Exception:
        pass
    vmem_cap = None
    try:
        vmem_cap = int(pltpu.get_tpu_info().vmem_capacity_bytes)
    except Exception:
        vmem_cap = None
    if vmem_cap is None:
        vmem_cap = (64 << 20) if "v7" in kind else (128 << 20)
    cores = 2 if "v7" in kind else 1
    is_v5e = ("v5 lite" in kind) or ("v5e" in kind) or ("v5lite" in kind)
    if vmem_cap >= (100 << 20) and not is_v5e:
        tm_d, th_d = 1024, 1024      # v6e / v5p / v4: 128 MiB VMEM -> big tiles (>= roofline knee)
    else:
        tm_d, th_d = 512, 512        # v7x (64 MiB/TC) / v5e (BW-limited): moderate 128-aligned tiles
    return cores, vmem_cap, tm_d, th_d


def _pick_hidden_tile(H, target):
    """Return (th_eff, H_pad): lane-aligned hidden tile and the zero-padded hidden size.

    th_eff always divides H_pad exactly, so every h step is a full tile; padded columns of
    W1/b1 and rows of W2 are zero and contribute exactly 0 to both matmuls.
    """
    target = max(128, _round_up(target, 128))
    Hp = _round_up(H, 128)
    if Hp <= target:
        return Hp, Hp
    for cand in range(target, 127, -128):
        if Hp % cand == 0:
            return cand, Hp
    # No clean 128-aligned divisor: pad H up to a multiple of the target tile instead.
    return target, _round_up(H, target)


def _vmem_footprint(tm, th, D, H_pad, cdt_bytes, out_bytes, resident):
    """Rough VMEM bytes for one pipelined step (double-buffered streamed blocks)."""
    x_tile = 2 * tm * D * cdt_bytes            # input row tile (double-buffered)
    out_tile = 2 * tm * D * out_bytes          # output row tile (double-buffered)
    acc = tm * D * 4                           # f32 accumulator scratch
    hidden = tm * th * (4 + cdt_bytes)         # f32 ReLU intermediate + cast copy
    b2 = D * 4
    if resident:
        w = 2 * D * H_pad * cdt_bytes + H_pad * 4           # full W1 + W2 + b1, single copy
    else:
        w = 2 * (2 * D * th * cdt_bytes) + 2 * th * 4       # double-buffered weight slices
    return x_tile + out_tile + acc + hidden + b2 + w


def ffn_kernel(x_ref, w1_ref, b1_ref, w2_ref, b2_ref, o_ref, acc_ref, *,
               th, weights_resident):
    """grid = (M row-tiles ["parallel"], H slices ["arbitrary" reduction, last])."""
    h_idx = pl.program_id(1)

    @pl.when(h_idx == 0)
    def _():
        acc_ref[...] = jnp.zeros_like(acc_ref)

    if weights_resident:
        # Full W1/W2/b1 live in VMEM (DMA'd exactly once); slice the current h window.
        h_off = pl.multiple_of(h_idx * th, 128)
        w1 = w1_ref[:, pl.ds(h_off, th)]
        b1 = b1_ref[:, pl.ds(h_off, th)]
        w2 = w2_ref[pl.ds(h_off, th), :]
    else:
        w1 = w1_ref[...]
        b1 = b1_ref[...]
        w2 = w2_ref[...]

    # lin1 slice: (tm, D) @ (D, th) on the MXU with f32 accumulation; bias + ReLU in f32 on VPU.
    h = jnp.dot(x_ref[...], w1, preferred_element_type=jnp.float32)
    h = jnp.maximum(h + b1, 0.0)
    # relu_dropout has p=0 (eval semantics) -> identity; nothing to do.

    # lin2 partial: (tm, th) @ (th, D), accumulate into the f32 VMEM scratch.
    acc_ref[...] += jnp.dot(h.astype(w2.dtype), w2, preferred_element_type=jnp.float32)

    @pl.when(h_idx == pl.num_programs(1) - 1)
    def _():
        o_ref[...] = (acc_ref[...] + b2_ref[...]).astype(o_ref.dtype)


def prepare_ffn_params(w1, b1, w2, b2, *, compute_dtype=jnp.bfloat16,
                       tm=None, th=None, vmem_limit_bytes=None):
    """One-time weight prep (transpose + cast + zero-pad H), kept out of the per-call hot path.

    PyTorch-convention shapes: w1 [H, D], b1 [H], w2 [D, H], b2 [D].
    Returns a dict consumed by transformer_ffn(prepared=...).
    """
    H, D = w1.shape
    cores, vmem_cap, tm_d, th_d = _chip_config()
    if vmem_limit_bytes is None:
        # Leave headroom for Mosaic internal scratch: ~48 MiB on v7x, ~100 MiB on 128 MiB chips.
        vmem_limit_bytes = min(vmem_cap - (16 << 20), (vmem_cap * 25) // 32)
    tm_t = tm if tm is not None else tm_d
    th_t = th if th is not None else th_d

    cdt = jnp.dtype(compute_dtype)
    cdt_b = cdt.itemsize
    out_b = 4                                   # conservative (output dtype unknown here)
    budget = int(vmem_limit_bytes * 0.9)

    th_eff, H_pad = _pick_hidden_tile(H, th_t)
    # Keep W1/W2 fully VMEM-resident when they fit comfortably (kills per-m re-streaming).
    w_bytes = 2 * D * H_pad * cdt_b + H_pad * 4
    resident = w_bytes <= int(0.45 * vmem_limit_bytes)

    # Auto-shrink tiles (and demote residency) until the estimated footprint fits.
    while _vmem_footprint(tm_t, th_eff, D, H_pad, cdt_b, out_b, resident) > budget:
        if tm_t > 256:
            tm_t //= 2
        elif th_eff > 256:
            th_eff, H_pad = _pick_hidden_tile(H, th_eff // 2)
        elif resident:
            resident = False
        elif tm_t > 128:
            tm_t //= 2
        elif th_eff > 128:
            th_eff, H_pad = _pick_hidden_tile(H, 128)
        else:
            break

    w1_t = jnp.zeros((D, H_pad), cdt).at[:, :H].set(jnp.asarray(w1).T.astype(cdt))   # (D, H_pad)
    w2_t = jnp.zeros((H_pad, D), cdt).at[:H, :].set(jnp.asarray(w2).T.astype(cdt))   # (H_pad, D)
    b1_2 = jnp.zeros((1, H_pad), jnp.float32).at[0, :H].set(jnp.asarray(b1, jnp.float32))
    b2_2 = jnp.asarray(b2, dtype=jnp.float32).reshape(1, D)

    return dict(w1_t=w1_t, b1=b1_2, w2_t=w2_t, b2=b2_2,
                D=D, H=H, H_pad=H_pad, th=th_eff, tm=tm_t,
                resident=resident, compute_dtype=cdt,
                vmem_limit_bytes=int(vmem_limit_bytes), num_cores=cores)


def transformer_ffn(x, w1=None, b1=None, w2=None, b2=None, *, prepared=None,
                    tm=None, th=None, compute_dtype=jnp.bfloat16, vmem_limit_bytes=None):
    """x: [..., D].  Either pass PyTorch-convention params (w1 [H,D], b1 [H], w2 [D,H], b2 [D])
    or a dict from prepare_ffn_params (preferred: keeps transpose/cast/pad out of the hot path)."""
    if prepared is None:
        prepared = prepare_ffn_params(w1, b1, w2, b2, compute_dtype=compute_dtype,
                                      tm=tm, th=th, vmem_limit_bytes=vmem_limit_bytes)
    p = prepared
    D, H_pad, th_eff = p["D"], p["H_pad"], p["th"]
    cdt = p["compute_dtype"]
    resident = p["resident"]
    cores = p["num_cores"]
    vmem_limit = p["vmem_limit_bytes"]

    lead = x.shape[:-1]
    assert x.shape[-1] == D
    M = math.prod(lead)
    x2 = x.reshape(M, D).astype(cdt)

    out_dtype = x.dtype
    cdt_b = jnp.dtype(cdt).itemsize
    out_b = jnp.dtype(out_dtype).itemsize

    sub = 16 if cdt_b == 2 else 8            # bf16 packs two rows per sublane
    tm_eff = min(p["tm"], _round_up(M, sub))
    # v7x megacore: make sure the "parallel" m axis splits across both TensorCores
    # whenever there is enough work.
    if cores >= 2 and M >= 512:
        tm_eff = min(tm_eff, max(256, _round_up(pl.cdiv(M, 2), 256)))

    # Last-resort footprint check at the runtime row tile (th is baked into prepared weights).
    budget = int(vmem_limit * 0.9)
    while (tm_eff > 128 and
           _vmem_footprint(tm_eff, th_eff, D, H_pad, cdt_b, out_b, resident) > budget):
        tm_eff = max(128, _round_up(tm_eff // 2, sub))

    n_m = pl.cdiv(M, tm_eff)
    n_h = H_pad // th_eff

    single = dict(pipeline_mode=pl.Buffered(1))   # blocks whose index never changes
    if resident:
        w1_spec = pl.BlockSpec((D, H_pad), lambda i, h: (0, 0), **single)
        b1_spec = pl.BlockSpec((1, H_pad), lambda i, h: (0, 0), **single)
        w2_spec = pl.BlockSpec((H_pad, D), lambda i, h: (0, 0), **single)
    else:
        stream = single if n_h == 1 else {}
        # TODO(synk): on v5e, bump streamed weight slices to pl.Buffered(3) if a trace shows
        # exposed DMA after raising tm (lowest HBM bandwidth of the three generations).
        w1_spec = pl.BlockSpec((D, th_eff), lambda i, h: (0, h), **stream)
        b1_spec = pl.BlockSpec((1, th_eff), lambda i, h: (0, h), **stream)
        w2_spec = pl.BlockSpec((th_eff, D), lambda i, h: (h, 0), **stream)

    in_specs = [
        pl.BlockSpec((tm_eff, D), lambda i, h: (i, 0)),                   # x row tile
        w1_spec, b1_spec, w2_spec,
        pl.BlockSpec((1, D), lambda i, h: (0, 0), **single),              # b2 (constant)
    ]

    # Faithful HBM traffic estimate: weights are re-streamed n_m times unless resident.
    w_factor = 1 if resident else n_m
    bytes_accessed = (M * D * cdt_b                                  # x read
                      + M * D * out_b                                # out write
                      + w_factor * (2 * D * H_pad * cdt_b + H_pad * 4)   # W1, W2, b1
                      + D * 4)                                       # b2
    cost = pl.CostEstimate(flops=4 * M * D * H_pad, transcendentals=0,
                           bytes_accessed=int(bytes_accessed))

    kernel = functools.partial(ffn_kernel, th=th_eff, weights_resident=resident)

    out2 = pl.pallas_call(
        kernel,
        out_shape=jax.ShapeDtypeStruct((M, D), out_dtype),
        grid_spec=pltpu.PrefetchScalarGridSpec(
            num_scalar_prefetch=0,
            grid=(n_m, n_h),
            in_specs=in_specs,
            out_specs=pl.BlockSpec((tm_eff, D), lambda i, h: (i, 0)),
            scratch_shapes=[pltpu.VMEM((tm_eff, D), jnp.float32)],
        ),
        compiler_params=pltpu.CompilerParams(
            dimension_semantics=("parallel", "arbitrary"),
            vmem_limit_bytes=int(vmem_limit)),
        cost_estimate=cost,
    )(x2, p["w1_t"], p["b1"], p["w2_t"], p["b2"])

    return out2.reshape(*lead, D)


def xavier_uniform(key, fan_out, fan_in, dtype=jnp.float32):
    # Matches nn.init.xavier_uniform_ for a [fan_out, fan_in] weight.
    bound = math.sqrt(6.0 / (fan_in + fan_out))
    return jax.random.uniform(key, (fan_out, fan_in), dtype=dtype,
                              minval=-bound, maxval=bound)


if __name__ == "__main__":
    # Small but lane-dense shapes (D, H multiples of 128 -> unmasked vector stores).
    B, S, D, H = 2, 16, 128, 256
    key = jax.random.PRNGKey(0)
    kx, kw1, kb1, kw2, kb2 = jax.random.split(key, 5)

    x = jax.random.normal(kx, (B, S, D), dtype=jnp.float32)

    # PyTorch-convention parameter shapes: lin1.weight [H, D], lin2.weight [D, H].
    w1 = xavier_uniform(kw1, H, D)                                    # lin1.weight
    b1 = jax.random.uniform(kb1, (H,), minval=-1.0 / math.sqrt(D),
                            maxval=1.0 / math.sqrt(D))                # lin1.bias (default init)
    w2 = xavier_uniform(kw2, D, H)                                    # lin2.weight
    b2 = jax.random.uniform(kb2, (D,), minval=-1.0 / math.sqrt(H),
                            maxval=1.0 / math.sqrt(H))                # lin2.bias (default init)

    # Pure-JAX reference (same semantics as the PyTorch forward in eval / p=0).
    ref = jnp.maximum(x @ w1.T + b1, 0.0) @ w2.T + b2

    # Full-precision operand path (tight check), one-shot param prep inside the wrapper.
    out_f32 = jax.block_until_ready(
        transformer_ffn(x, w1, b1, w2, b2, compute_dtype=jnp.float32))
    assert out_f32.shape == (B, S, D)
    assert jnp.allclose(out_f32, ref, atol=1e-3, rtol=1e-3)

    # Preferred hot-path usage: prepare params once (transpose/cast/pad outside the per-call
    # path), then call with bf16 MXU operands + f32 accumulation.  Looser tolerance.
    prepared = prepare_ffn_params(w1, b1, w2, b2, compute_dtype=jnp.bfloat16)
    out_bf16 = jax.block_until_ready(transformer_ffn(x, prepared=prepared))
    assert out_bf16.shape == (B, S, D)
    assert jnp.allclose(out_bf16, ref, atol=6e-2, rtol=6e-2)

    print("KERNEL_OK")
</pallas_src>

<mosaic_0001>
module attributes {stable_mosaic.version = 11 : i64} {
  func.func @ffn_kernel(%arg0: i32, %arg1: i32, %arg2: memref<32x128xf32, #tpu.memory_space<vmem>>, %arg3: memref<128x256xf32, #tpu.memory_space<vmem>>, %arg4: memref<1x256xf32, #tpu.memory_space<vmem>>, %arg5: memref<256x128xf32, #tpu.memory_space<vmem>>, %arg6: memref<1x128xf32, #tpu.memory_space<vmem>>, %arg7: memref<32x128xf32, #tpu.memory_space<vmem>>, %arg8: memref<32x128xf32, #tpu.memory_space<vmem>>) attributes {dimension_semantics = [#tpu.dimension_semantics<parallel>, #tpu.dimension_semantics<arbitrary>], iteration_bounds = array<i64: 1, 1>, scalar_prefetch = 0 : i64, scratch_operands = 1 : i64, tpu.core_type = #tpu.core_type<tc>, window_params = [{transform_indices = @transform_0, window_bounds = array<i64: 32, 128>}, {pipeline_mode = #tpu.pipeline_mode<synchronous>, transform_indices = @transform_1, window_bounds = array<i64: 128, 256>}, {pipeline_mode = #tpu.pipeline_mode<synchronous>, transform_indices = @transform_2, window_bounds = array<i64: 1, 256>}, {pipeline_mode = #tpu.pipeline_mode<synchronous>, transform_indices = @transform_3, window_bounds = array<i64: 256, 128>}, {pipeline_mode = #tpu.pipeline_mode<synchronous>, transform_indices = @transform_4, window_bounds = array<i64: 1, 128>}, {transform_indices = @transform_5, window_bounds = array<i64: 32, 128>}]} {
    %c0_i32 = arith.constant 0 : i32
    %0 = arith.cmpi eq, %arg1, %c0_i32 : i32
    %1 = arith.extui %0 : i1 to i32
    %c0_i32_0 = arith.constant 0 : i32
    %2 = arith.cmpi ne, %1, %c0_i32_0 : i32
    scf.if %2 {
      %cst_13 = arith.constant 0.000000e+00 : f32
      %24 = vector.broadcast %cst_13 : f32 to vector<32x128xf32>
      %c0_14 = arith.constant 0 : index
      %c0_15 = arith.constant 0 : index
      %25 = vector.load %arg8[%c0_14, %c0_15] : memref<32x128xf32, #tpu.memory_space<vmem>>, vector<32x128xf32>
      tpu.vector_store %arg8[%c0_14, %c0_15], %24 {strides = array<i32>} : memref<32x128xf32, #tpu.memory_space<vmem>>, vector<32x128xf32>,
    } else {
    }
    %c256_i32 = arith.constant 256 : i32
    %3 = arith.muli %arg1, %c256_i32 : i32
    %4 = tpu.assume_multiple %3, 128 : i32
    %c0 = arith.constant 0 : index
    %5 = arith.index_cast %4 : i32 to index
    %6 = vector.load %arg3[%c0, %5] : memref<128x256xf32, #tpu.memory_space<vmem>>, vector<128x256xf32>
    %c0_1 = arith.constant 0 : index
    %7 = arith.index_cast %4 : i32 to index
    %8 = vector.load %arg4[%c0_1, %7] : memref<1x256xf32, #tpu.memory_space<vmem>>, vector<1x256xf32>
    %9 = arith.index_cast %4 : i32 to index
    %c0_2 = arith.constant 0 : index
    %10 = vector.load %arg5[%9, %c0_2] : memref<256x128xf32, #tpu.memory_space<vmem>>, vector<256x128xf32>
    %c0_3 = arith.constant 0 : index
    %c0_4 = arith.constant 0 : index
    %11 = vector.load %arg2[%c0_3, %c0_4] : memref<32x128xf32, #tpu.memory_space<vmem>>, vector<32x128xf32>
    %cst = arith.constant dense<0.000000e+00> : vector<32x256xf32>
    %12 = tpu.matmul %11, %6, %cst {dimension_numbers = #tpu.dot_dimension_numbers<[1], [0], [0], [1], [0, 0, 1, 1], [], []>} : vector<32x128xf32>, vector<128x256xf32>, vector<32x256xf32> -> vector<32x256xf32>
    %13 = vector.broadcast %8 : vector<1x256xf32> to vector<32x256xf32>
    %14 = arith.addf %12, %13 : vector<32x256xf32>
    %cst_5 = arith.constant 0.000000e+00 : f32
    %15 = vector.broadcast %cst_5 : f32 to vector<32x256xf32>
    %16 = arith.maximumf %14, %15 : vector<32x256xf32>
    %c0_6 = arith.constant 0 : index
    %c0_7 = arith.constant 0 : index
    %17 = vector.load %arg8[%c0_6, %c0_7] : memref<32x128xf32, #tpu.memory_space<vmem>>, vector<32x128xf32>
    %cst_8 = arith.constant dense<0.000000e+00> : vector<32x128xf32>
    %18 = tpu.matmul %16, %10, %cst_8 {dimension_numbers = #tpu.dot_dimension_numbers<[1], [0], [0], [1], [0, 0, 1, 1], [], []>} : vector<32x256xf32>, vector<256x128xf32>, vector<32x128xf32> -> vector<32x128xf32>
    %19 = arith.addf %17, %18 : vector<32x128xf32>
    %c0_9 = arith.constant 0 : index
    %c0_10 = arith.constant 0 : index
    %20 = vector.load %arg8[%c0_9, %c0_10] : memref<32x128xf32, #tpu.memory_space<vmem>>, vector<32x128xf32>
    tpu.vector_store %arg8[%c0_9, %c0_10], %19 {strides = array<i32>} : memref<32x128xf32, #tpu.memory_space<vmem>>, vector<32x128xf32>,
    %c0_i32_11 = arith.constant 0 : i32
    %21 = arith.cmpi eq, %arg1, %c0_i32_11 : i32
    %22 = arith.extui %21 : i1 to i32
    %c0_i32_12 = arith.constant 0 : i32
    %23 = arith.cmpi ne, %22, %c0_i32_12 : i32
    scf.if %23 {
      %c0_13 = arith.constant 0 : index
      %c0_14 = arith.constant 0 : index
      %24 = vector.load %arg8[%c0_13, %c0_14] : memref<32x128xf32, #tpu.memory_space<vmem>>, vector<32x128xf32>
      %c0_15 = arith.constant 0 : index
      %c0_16 = arith.constant 0 : index
      %25 = vector.load %arg6[%c0_15, %c0_16] : memref<1x128xf32, #tpu.memory_space<vmem>>, vector<1x128xf32>
      %26 = vector.broadcast %25 : vector<1x128xf32> to vector<32x128xf32>
      %27 = arith.addf %24, %26 : vector<32x128xf32>
      %c0_17 = arith.constant 0 : index
      %c0_18 = arith.constant 0 : index
      %28 = vector.load %arg7[%c0_17, %c0_18] : memref<32x128xf32, #tpu.memory_space<vmem>>, vector<32x128xf32>
      tpu.vector_store %arg7[%c0_17, %c0_18], %27 {strides = array<i32>} : memref<32x128xf32, #tpu.memory_space<vmem>>, vector<32x128xf32>,
    } else {
    }
    return
  }
  func.func @transform_0(%arg0: i32, %arg1: i32) -> (i32, i32) {
    %c0_i32 = arith.constant 0 : i32
    %c0_i32_0 = arith.constant 0 : i32
    return %arg0, %c0_i32 : i32, i32
  }
  func.func @transform_1(%arg0: i32, %arg1: i32) -> (i32, i32) {
    %c0_i32 = arith.constant 0 : i32
    %c0_i32_0 = arith.constant 0 : i32
    %c0_i32_1 = arith.constant 0 : i32
    return %c0_i32, %c0_i32_0 : i32, i32
  }
  func.func @transform_2(%arg0: i32, %arg1: i32) -> (i32, i32) {
    %c0_i32 = arith.constant 0 : i32
    %c0_i32_0 = arith.constant 0 : i32
    %c0_i32_1 = arith.constant 0 : i32
    return %c0_i32, %c0_i32_0 : i32, i32
  }
  func.func @transform_3(%arg0: i32, %arg1: i32) -> (i32, i32) {
    %c0_i32 = arith.constant 0 : i32
    %c0_i32_0 = arith.constant 0 : i32
    %c0_i32_1 = arith.constant 0 : i32
    return %c0_i32, %c0_i32_0 : i32, i32
  }
  func.func @transform_4(%arg0: i32, %arg1: i32) -> (i32, i32) {
    %c0_i32 = arith.constant 0 : i32
    %c0_i32_0 = arith.constant 0 : i32
    %c0_i32_1 = arith.constant 0 : i32
    return %c0_i32, %c0_i32_0 : i32, i32
  }
  func.func @transform_5(%arg0: i32, %arg1: i32) -> (i32, i32) {
    %c0_i32 = arith.constant 0 : i32
    %c0_i32_0 = arith.constant 0 : i32
    return %arg0, %c0_i32 : i32, i32
  }
}

</mosaic_0001>

<llo_original>
// kernel: tpu_custom_call.1
$region0: #{tpu_custom_call.1}
  #allocation0 [shape = 'u32[]', space=smem, size = 0x4, offset = 0x4, fixed_abs, tag = 'smem constant byte address 0x4 - core index']
  #allocation1 [shape = 'u32[72,128]{1,0:T(1,128)}', space=vmem, size = 0x9000, scoped, tag = 'internal scratch']
  #allocation2 [shape = 'f32[32,128]{1,0:T(8,128)}', space=vmem, size = 0x4000, scoped, tag = 'scratch operand']
  %s0 = inlined_call_operand.hbm [shape: f32[32,128], index: 0, kind: input, shape index: {}]
  %s1 = inlined_call_operand.hbm [shape: f32[128,256], index: 1, kind: input, shape index: {}]
  %s2 = inlined_call_operand.hbm [shape: f32[1,256], index: 2, kind: input, shape index: {}]
  %s3 = inlined_call_operand.hbm [shape: f32[256,128], index: 3, kind: input, shape index: {}]
  %s4 = inlined_call_operand.vmem [shape: f32[1,128], index: 4, kind: input, shape index: {}]
  %s5 = inlined_call_operand.hbm [shape: f32[32,128], index: 5, kind: output, shape index: {}]
  %s6 = sld [smem:[#allocation0]]
  $region54: #{tpu_custom_call.1} parent=0
    _
  %s8 = ssub.s32 1, %s6
  %s9 = scalar_select 0, %s8, %s6
  $region1: #{tpu_custom_call.1} parent=0
    #allocation3 [shape = 'u8[16384]{0}', space=vmem, size = 0x4000, scoped, tag = 'input window, operand 0, single buffered']
    #allocation4 [shape = 's32[1]{0}', space=sflag, size = 0x4, scoped, tag = 'scoped memory for tpu_custom_call.1']
    #allocation5 [shape = 's32[1]{0}', space=sflag, size = 0x4, scoped, tag = 'scoped memory for tpu_custom_call.1']
    #allocation6 [shape = 'u8[131072]{0}', space=vmem, size = 0x20000, scoped, tag = 'input window, operand 1, single buffered']
    #allocation7 [shape = 's32[1]{0}', space=sflag, size = 0x4, scoped, tag = 'scoped memory for tpu_custom_call.1']
    #allocation8 [shape = 'u8[1024]{0}', space=vmem, size = 0x400, scoped, tag = 'input window, operand 2, single buffered']
    #allocation9 [shape = 'u8[131072]{0}', space=vmem, size = 0x20000, scoped, tag = 'input window, operand 3, single buffered']
    #allocation10 [shape = 's32[1]{0}', space=sflag, size = 0x4, scoped, tag = 'scoped memory for tpu_custom_call.1']
    #allocation11 [shape = 'u8[16384]{0}', space=vmem, size = 0x4000, scoped, tag = 'output window, operand 0, single buffered']
    %10 = vsyncpa [#allocation4], 0
    %11 = vsyncpa [#allocation7], 0
    %12 = vsyncpa [#allocation10], 0
    %13 = vsyncpa [#allocation5], 0
    // Predicated region
    $region2: #{tpu_custom_call.1} parent=1 // pred_check
      _
    $region3: #{tpu_custom_call.1} parent=1 // pred_check_branch
      %15 = sbr.rel (0) target = $region5
    $region4: #{tpu_custom_call.1} parent=1 // pred_region
      %17 = vsyncadd [#allocation4], 0
      %s18 = sshll.u32 %s0, 4
      %s19 = int_to_ptr.hbm [resolvable:$true] %s18
      %s20 = sshll.u32 [#allocation3], 4
      %s21 = int_to_ptr.vmem [resolvable:$true] %s20
      %26 = dma.hbm_to_vmem [thread:$0]  %s19, 512, %s21, [#allocation4], 128, 128, 8
    $region5: #{tpu_custom_call.1} parent=1 // pred_fallthru
      _
    // Predicated region
    $region6: #{tpu_custom_call.1} parent=1 // pred_check
      _
    $region7: #{tpu_custom_call.1} parent=1 // pred_check_branch
      %28 = sbr.rel (0) target = $region9
    $region8: #{tpu_custom_call.1} parent=1 // pred_region
      %30 = vsyncadd [#allocation7], 0
      %s31 = sshll.u32 %s1, 4
      %s32 = int_to_ptr.hbm [resolvable:$true] %s31
      %s33 = sshll.u32 [#allocation6], 4
      %s34 = int_to_ptr.vmem [resolvable:$true] %s33
      %39 = dma.hbm_to_vmem [thread:$0]  %s32, 4096, %s34, [#allocation7], 256, 256, 16
    $region9: #{tpu_custom_call.1} parent=1 // pred_fallthru
      _
    // Predicated region
    $region10: #{tpu_custom_call.1} parent=1 // pred_check
      _
    $region11: #{tpu_custom_call.1} parent=1 // pred_check_branch
      %41 = sbr.rel (0) target = $region13
    $region12: #{tpu_custom_call.1} parent=1 // pred_region
      %43 = vsyncadd [#allocation7], 0
      %s45 = sshll.u32 %s2, 4
      %s46 = int_to_ptr.hbm [resolvable:$true] %s45
      %s47 = sshll.u32 [#allocation8], 4
      %s48 = int_to_ptr.vmem [resolvable:$true] %s47
      %50 = dma.hbm_to_vmem [thread:$0]  %s46, 32, %s48, [#allocation7]
    $region13: #{tpu_custom_call.1} parent=1 // pred_fallthru
      _
    // Predicated region
    $region14: #{tpu_custom_call.1} parent=1 // pred_check
      _
    $region15: #{tpu_custom_call.1} parent=1 // pred_check_branch
      %52 = sbr.rel (0) target = $region17
    $region16: #{tpu_custom_call.1} parent=1 // pred_region
      %54 = vsyncadd [#allocation10], 0
      %s55 = sshll.u32 %s3, 4
      %s56 = int_to_ptr.hbm [resolvable:$true] %s55
      %s57 = sshll.u32 [#allocation9], 4
      %s58 = int_to_ptr.vmem [resolvable:$true] %s57
      %63 = dma.hbm_to_vmem [thread:$0]  %s56, 4096, %s58, [#allocation10], 128, 128, 8
    $region17: #{tpu_custom_call.1} parent=1 // pred_fallthru
      _
    // Predicated region
    $region18: #{tpu_custom_call.1} parent=1 // pred_check
      _
    $region19: #{tpu_custom_call.1} parent=1 // pred_check_branch
      %65 = sbr.rel (0) target = $region21
    $region20: #{tpu_custom_call.1} parent=1 // pred_region
      _
    $region21: #{tpu_custom_call.1} parent=1 // pred_fallthru
      _
    // Predicated region
    $region22: #{tpu_custom_call.1} parent=1 // pred_check
      _
    $region23: #{tpu_custom_call.1} parent=1 // pred_check_branch
      %67 = sbr.rel (0) target = $region25
    $region24: #{tpu_custom_call.1} parent=1 // pred_region
      %69 = dma.done [#allocation4], 512
    $region25: #{tpu_custom_call.1} parent=1 // pred_fallthru
      _
    // Predicated region
    $region26: #{tpu_custom_call.1} parent=1 // pred_check
      _
    $region27: #{tpu_custom_call.1} parent=1 // pred_check_branch
      %71 = sbr.rel (0) target = $region29
    $region28: #{tpu_custom_call.1} parent=1 // pred_region
      %73 = dma.done [#allocation7], 4096
    $region29: #{tpu_custom_call.1} parent=1 // pred_fallthru
      _
    // Predicated region
    $region30: #{tpu_custom_call.1} parent=1 // pred_check
      _
    $region31: #{tpu_custom_call.1} parent=1 // pred_check_branch
      %75 = sbr.rel (0) target = $region33
    $region32: #{tpu_custom_call.1} parent=1 // pred_region
      %77 = dma.done [#allocation7], 32
    $region33: #{tpu_custom_call.1} parent=1 // pred_fallthru
      _
    // Predicated region
    $region34: #{tpu_custom_call.1} parent=1 // pred_check
      _
    $region35: #{tpu_custom_call.1} parent=1 // pred_check_branch
      %79 = sbr.rel (0) target = $region37
    $region36: #{tpu_custom_call.1} parent=1 // pred_region
      %81 = dma.done [#allocation10], 4096
    $region37: #{tpu_custom_call.1} parent=1 // pred_fallthru
      _
    %p82 = scmp.eq.s32.totalorder 0, 0
    // Predicated region
    $region38: #{tpu_custom_call.1} parent=1 // pred_check
      %p83 = pneg %p82
    $region39: #{tpu_custom_call.1} parent=1 // pred_check_branch
      %85 = sbr.rel (%p83) target = $region41
    $region40: #{tpu_custom_call.1} parent=1 // pred_region
      %86 = vst [vmem:[#allocation2] sm:$0xff] 0.0
      %87 = vst [vmem:[#allocation2 + $0x8] sm:$0xff] 0.0
      %88 = vst [vmem:[#allocation2 + $0x10] sm:$0xff] 0.0
      %89 = vst [vmem:[#allocation2 + $0x18] sm:$0xff] 0.0
    $region41: #{tpu_custom_call.1} parent=1 // pred_fallthru
      _
    %s90 = smul.u32 0, 256
    %s91 = sshra.s32 %s90, 7
    %s92 = sand.u32 %s90, 127
    %s93 = smul.addr %s91, 8
    %s94 = scalar_lea.vmem [#allocation6], %s93
    %v95 = vld [vmem:[%s94] sm:$0xff]
    %v96 = vld [vmem:[%s94 + $0x8] sm:$0xff]
    %v97 = vld [vmem:[%s94 + $0x10] sm:$0xff]
    %v98 = vld [vmem:[%s94 + $0x18] sm:$0xff]
    %v99 = vld [vmem:[%s94 + $0x20] sm:$0xff]
    %v100 = vld [vmem:[%s94 + $0x28] sm:$0xff]
    %v101 = vld [vmem:[%s94 + $0x30] sm:$0xff]
    %v102 = vld [vmem:[%s94 + $0x38] sm:$0xff]
    %v103 = vld [vmem:[%s94 + $0x40] sm:$0xff]
    %v104 = vld [vmem:[%s94 + $0x48] sm:$0xff]
    %v105 = vld [vmem:[%s94 + $0x50] sm:$0xff]
    %v106 = vld [vmem:[%s94 + $0x58] sm:$0xff]
    %v107 = vld [vmem:[%s94 + $0x60] sm:$0xff]
    %v108 = vld [vmem:[%s94 + $0x68] sm:$0xff]
    %v109 = vld [vmem:[%s94 + $0x70] sm:$0xff]
    %v110 = vld [vmem:[%s94 + $0x78] sm:$0xff]
    %v111 = vld [vmem:[%s94 + $0x80] sm:$0xff]
    %v112 = vld [vmem:[%s94 + $0x88] sm:$0xff]
    %v113 = vld [vmem:[%s94 + $0x90] sm:$0xff]
    %v114 = vld [vmem:[%s94 + $0x98] sm:$0xff]
    %v115 = vld [vmem:[%s94 + $0xa0] sm:$0xff]
    %v116 = vld [vmem:[%s94 + $0xa8] sm:$0xff]
    %v117 = vld [vmem:[%s94 + $0xb0] sm:$0xff]
    %v118 = vld [vmem:[%s94 + $0xb8] sm:$0xff]
    %v119 = vld [vmem:[%s94 + $0xc0] sm:$0xff]
    %v120 = vld [vmem:[%s94 + $0xc8] sm:$0xff]
    %v121 = vld [vmem:[%s94 + $0xd0] sm:$0xff]
    %v122 = vld [vmem:[%s94 + $0xd8] sm:$0xff]
    %v123 = vld [vmem:[%s94 + $0xe0] sm:$0xff]
    %v124 = vld [vmem:[%s94 + $0xe8] sm:$0xff]
    %v125 = vld [vmem:[%s94 + $0xf0] sm:$0xff]
    %v126 = vld [vmem:[%s94 + $0xf8] sm:$0xff]
    %s127 = scalar_lea.vmem [#allocation8], %s91
    %v128 = vld [vmem:[%s127] sm:$0x3]
    %s129 = scalar_lea.vmem [#allocation9], %s90
    %v130 = vld [vmem:[%s129] sm:$0xff]
    %v131 = vld [vmem:[%s129 + $0x8] sm:$0xff]
    %v132 = vld [vmem:[%s129 + $0x10] sm:$0xff]
    %v133 = vld [vmem:[%s129 + $0x18] sm:$0xff]
    %v134 = vld [vmem:[%s129 + $0x20] sm:$0xff]
    %v135 = vld [vmem:[%s129 + $0x28] sm:$0xff]
    %v136 = vld [vmem:[%s129 + $0x30] sm:$0xff]
    %v137 = vld [vmem:[%s129 + $0x38] sm:$0xff]
    %v138 = vld [vmem:[%s129 + $0x40] sm:$0xff]
    %v139 = vld [vmem:[%s129 + $0x48] sm:$0xff]
    %v140 = vld [vmem:[%s129 + $0x50] sm:$0xff]
    %v141 = vld [vmem:[%s129 + $0x58] sm:$0xff]
    %v142 = vld [vmem:[%s129 + $0x60] sm:$0xff]
    %v143 = vld [vmem:[%s129 + $0x68] sm:$0xff]
    %v144 = vld [vmem:[%s129 + $0x70] sm:$0xff]
    %v145 = vld [vmem:[%s129 + $0x78] sm:$0xff]
    %v146 = vld [vmem:[%s129 + $0x80] sm:$0xff]
    %v147 = vld [vmem:[%s129 + $0x88] sm:$0xff]
    %v148 = vld [vmem:[%s129 + $0x90] sm:$0xff]
    %v149 = vld [vmem:[%s129 + $0x98] sm:$0xff]
    %v150 = vld [vmem:[%s129 + $0xa0] sm:$0xff]
    %v151 = vld [vmem:[%s129 + $0xa8] sm:$0xff]
    %v152 = vld [vmem:[%s129 + $0xb0] sm:$0xff]
    %v153 = vld [vmem:[%s129 + $0xb8] sm:$0xff]
    %v154 = vld [vmem:[%s129 + $0xc0] sm:$0xff]
    %v155 = vld [vmem:[%s129 + $0xc8] sm:$0xff]
    %v156 = vld [vmem:[%s129 + $0xd0] sm:$0xff]
    %v157 = vld [vmem:[%s129 + $0xd8] sm:$0xff]
    %v158 = vld [vmem:[%s129 + $0xe0] sm:$0xff]
    %v159 = vld [vmem:[%s129 + $0xe8] sm:$0xff]
    %v160 = vld [vmem:[%s129 + $0xf0] sm:$0xff]
    %v161 = vld [vmem:[%s129 + $0xf8] sm:$0xff]
    %v162 = vld [vmem:[#allocation3] sm:$0xff]
    %v163 = vld [vmem:[#allocation3 + $0x8] sm:$0xff]
    %v164 = vld [vmem:[#allocation3 + $0x10] sm:$0xff]
    %v165 = vld [vmem:[#allocation3 + $0x18] sm:$0xff]
    %v167 = vperm.slane %v128, 0
    %v168 = vperm.slane %v128, 1
    %171 = vmatpush.msra.mxu0 %v125
    %172 = vmatpush.msra.mxu0 %v123
    %173 = vmatpush.msra.mxu0 %v121
    %174 = vmatpush.msra.mxu0 %v119
    %175 = vmatpush.msra.mxu0 %v117
    %176 = vmatpush.msra.mxu0 %v115
    %177 = vmatpush.msra.mxu0 %v113
    %178 = vmatpush.msra.mxu0 %v111
    %179 = vmatpush.msra.mxu0 %v109
    %180 = vmatpush.msra.mxu0 %v107
    %181 = vmatpush.msra.mxu0 %v105
    %182 = vmatpush.msra.mxu0 %v103
    %183 = vmatpush.msra.mxu0 %v101
    %184 = vmatpush.msra.mxu0 %v99
    %185 = vmatpush.msra.mxu0 %v97
    %186 = vmatpush.msra.mxu0 %v95
    %187 = vmatmul.f32.gmra.mxu0 %v162
    %v188 = vpop.f32.mrf.mxu0
    %v189 = vadd.f32 %v167, %v188
    %190 = vmatmul.f32.gmra.mxu0 %v163
    %v191 = vpop.f32.mrf.mxu0
    %v192 = vadd.f32 %v167, %v191
    %193 = vmatmul.f32.gmra.mxu0 %v164
    %v194 = vpop.f32.mrf.mxu0
    %v195 = vadd.f32 %v167, %v194
    %196 = vmatmul.f32.gmra.mxu0 %v165
    %v197 = vpop.f32.mrf.mxu0
    %v198 = vadd.f32 %v167, %v197
    %199 = vdwg.mxu0
    %200 = vmatpush.msra.mxu0 %v126
    %201 = vmatpush.msra.mxu0 %v124
    %202 = vmatpush.msra.mxu0 %v122
    %203 = vmatpush.msra.mxu0 %v120
    %204 = vmatpush.msra.mxu0 %v118
    %205 = vmatpush.msra.mxu0 %v116
    %206 = vmatpush.msra.mxu0 %v114
    %207 = vmatpush.msra.mxu0 %v112
    %208 = vmatpush.msra.mxu0 %v110
    %209 = vmatpush.msra.mxu0 %v108
    %210 = vmatpush.msra.mxu0 %v106
    %211 = vmatpush.msra.mxu0 %v104
    %212 = vmatpush.msra.mxu0 %v102
    %213 = vmatpush.msra.mxu0 %v100
    %214 = vmatpush.msra.mxu0 %v98
    %215 = vmatpush.msra.mxu0 %v96
    %216 = vmatmul.f32.gmra.mxu0 %v162
    %v217 = vpop.f32.mrf.mxu0
    %v218 = vadd.f32 %v168, %v217
    %219 = vmatmul.f32.gmra.mxu0 %v163
    %v220 = vpop.f32.mrf.mxu0
    %v221 = vadd.f32 %v168, %v220
    %222 = vmatmul.f32.gmra.mxu0 %v164
    %v223 = vpop.f32.mrf.mxu0
    %v224 = vadd.f32 %v168, %v223
    %225 = vmatmul.f32.gmra.mxu0 %v165
    %v226 = vpop.f32.mrf.mxu0
    %v227 = vadd.f32 %v168, %v226
    %228 = vdwg.mxu0
    %v229 = vmax.f32 %v189, 0.0
    %v230 = vmax.f32 %v218, 0.0
    %v231 = vmax.f32 %v192, 0.0
    %v232 = vmax.f32 %v221, 0.0
    %v233 = vmax.f32 %v195, 0.0
    %v234 = vmax.f32 %v224, 0.0
    %v235 = vmax.f32 %v198, 0.0
    %v236 = vmax.f32 %v227, 0.0
    %v237 = vld [vmem:[#allocation2] sm:$0xff]
    %v238 = vld [vmem:[#allocation2 + $0x8] sm:$0xff]
    %v239 = vld [vmem:[#allocation2 + $0x10] sm:$0xff]
    %v240 = vld [vmem:[#allocation2 + $0x18] sm:$0xff]
    %241 = vmatpush.msra.mxu0 %v145
    %242 = vmatpush.msra.mxu0 %v144
    %243 = vmatpush.msra.mxu0 %v143
    %244 = vmatpush.msra.mxu0 %v142
    %245 = vmatpush.msra.mxu0 %v141
    %246 = vmatpush.msra.mxu0 %v140
    %247 = vmatpush.msra.mxu0 %v139
    %248 = vmatpush.msra.mxu0 %v138
    %249 = vmatpush.msra.mxu0 %v137
    %250 = vmatpush.msra.mxu0 %v136
    %251 = vmatpush.msra.mxu0 %v135
    %252 = vmatpush.msra.mxu0 %v134
    %253 = vmatpush.msra.mxu0 %v133
    %254 = vmatpush.msra.mxu0 %v132
    %255 = vmatpush.msra.mxu0 %v131
    %256 = vmatpush.msra.mxu0 %v130
    %257 = vmatmul.f32.gmra.mxu0 %v229
    %v258 = vpop.f32.mrf.mxu0
    %v259 = vadd.f32 0.0, %v258
    %260 = vmatmul.f32.gmra.mxu0 %v231
    %v261 = vpop.f32.mrf.mxu0
    %v262 = vadd.f32 0.0, %v261
    %263 = vmatmul.f32.gmra.mxu0 %v233
    %v264 = vpop.f32.mrf.mxu0
    %v265 = vadd.f32 0.0, %v264
    %266 = vmatmul.f32.gmra.mxu0 %v235
    %v267 = vpop.f32.mrf.mxu0
    %v268 = vadd.f32 0.0, %v267
    %269 = vdwg.mxu0
    %270 = vmatpush.msra.mxu0 %v161
    %271 = vmatpush.msra.mxu0 %v160
    %272 = vmatpush.msra.mxu0 %v159
    %273 = vmatpush.msra.mxu0 %v158
    %274 = vmatpush.msra.mxu0 %v157
    %275 = vmatpush.msra.mxu0 %v156
    %276 = vmatpush.msra.mxu0 %v155
    %277 = vmatpush.msra.mxu0 %v154
    %278 = vmatpush.msra.mxu0 %v153
    %279 = vmatpush.msra.mxu0 %v152
    %280 = vmatpush.msra.mxu0 %v151
    %281 = vmatpush.msra.mxu0 %v150
    %282 = vmatpush.msra.mxu0 %v149
    %283 = vmatpush.msra.mxu0 %v148
    %284 = vmatpush.msra.mxu0 %v147
    %285 = vmatpush.msra.mxu0 %v146
    %286 = vmatmul.f32.gmra.mxu0 %v230
    %v287 = vpop.f32.mrf.mxu0
    %v288 = vadd.f32 %v259, %v287
    %289 = vmatmul.f32.gmra.mxu0 %v232
    %v290 = vpop.f32.mrf.mxu0
    %v291 = vadd.f32 %v262, %v290
    %292 = vmatmul.f32.gmra.mxu0 %v234
    %v293 = vpop.f32.mrf.mxu0
    %v294 = vadd.f32 %v265, %v293
    %295 = vmatmul.f32.gmra.mxu0 %v236
    %v296 = vpop.f32.mrf.mxu0
    %v297 = vadd.f32 %v268, %v296
    %298 = vdwg.mxu0
    %v299 = vadd.f32 %v237, %v288
    %v300 = vadd.f32 %v238, %v291
    %v301 = vadd.f32 %v239, %v294
    %v302 = vadd.f32 %v240, %v297
    %303 = vst [vmem:[#allocation2] sm:$0xff] %v299
    %304 = vst [vmem:[#allocation2 + $0x8] sm:$0xff] %v300
    %305 = vst [vmem:[#allocation2 + $0x10] sm:$0xff] %v301
    %306 = vst [vmem:[#allocation2 + $0x18] sm:$0xff] %v302
    // Predicated region
    $region42: #{tpu_custom_call.1} parent=1 // pred_check
      %p307 = pneg %p82
    $region43: #{tpu_custom_call.1} parent=1 // pred_check_branch
      %309 = sbr.rel (%p307) target = $region45
    $region44: #{tpu_custom_call.1} parent=1 // pred_region
      %v310 = vld [vmem:[#allocation2] sm:$0xff]
      %v311 = vld [vmem:[#allocation2 + $0x8] sm:$0xff]
      %v312 = vld [vmem:[#allocation2 + $0x10] sm:$0xff]
      %v313 = vld [vmem:[#allocation2 + $0x18] sm:$0xff]
      %v314 = vld [vmem:[%s4] sm:$0x1]
      %v316 = vperm.slane %v314, 0
      %v318 = vadd.f32 %v310, %v316
      %v319 = vadd.f32 %v311, %v316
      %v320 = vadd.f32 %v312, %v316
      %v321 = vadd.f32 %v313, %v316
      %322 = vst [vmem:[#allocation11] sm:$0xff] %v318
      %323 = vst [vmem:[#allocation11 + $0x8] sm:$0xff] %v319
      %324 = vst [vmem:[#allocation11 + $0x10] sm:$0xff] %v320
      %325 = vst [vmem:[#allocation11 + $0x18] sm:$0xff] %v321
    $region45: #{tpu_custom_call.1} parent=1 // pred_fallthru
      _
    // Predicated region
    $region46: #{tpu_custom_call.1} parent=1 // pred_check
      _
    $region47: #{tpu_custom_call.1} parent=1 // pred_check_branch
      %327 = sbr.rel (0) target = $region49
    $region48: #{tpu_custom_call.1} parent=1 // pred_region
      %329 = vsyncadd [#allocation5], 0
      %s330 = sshll.u32 [#allocation11], 4
      %s331 = int_to_ptr.vmem [resolvable:$true] %s330
      %s332 = sshll.u32 %s5, 4
      %s333 = int_to_ptr.hbm [resolvable:$true] %s332
      %338 = dma.vmem_to_hbm [thread:$0]  %s331, 512, %s333, [#allocation5], 128, 128, 8
    $region49: #{tpu_custom_call.1} parent=1 // pred_fallthru
      _
    // Predicated region
    $region50: #{tpu_custom_call.1} parent=1 // pred_check
      _
    $region51: #{tpu_custom_call.1} parent=1 // pred_check_branch
      %340 = sbr.rel (0) target = $region53
    $region52: #{tpu_custom_call.1} parent=1 // pred_region
      %342 = dma.done [#allocation5], 512
    $region53: #{tpu_custom_call.1} parent=1 // pred_fallthru
      _
    %343 = vsyncpa [#allocation4], 1
    %344 = vsyncpa [#allocation7], 1
    %345 = vsyncpa [#allocation10], 1
    %346 = vsyncpa [#allocation5], 1

</llo_original>
